<compile_context>
chip_gen: v7x
topology: tpu7x:2x2x1
jax: 0.10.0
libtpu: 0.0.40
codegen_flags: <defaults>
</compile_context>

<pallas_src>
import jax
import jax.numpy as jnp
from jax.experimental import pallas as pl
from jax.experimental.pallas import tpu as pltpu

# ---- module hyper-parameters / shapes (small, consistent with the nn.Module) ----
B = 2            # batch
C = 8            # input_channel
H = 8            # hidden_channel
K = 3            # kernel size
DIL = 2          # dilation
PAD = 2          # padding (non-causal branch)
T = 64           # time steps  (B*T = 128 -> exactly one lane tile, fully lane-dense)
EPS = 1e-8
BT = B * T
T_OUT = T + 2 * PAD - DIL * (K - 1)     # conv output length
GROUPS = H // 2                         # dconv1d groups = hidden_channel / 2
IN_PER_G = C // GROUPS
OUT_PER_G = H // GROUPS
B_PAD = 8                               # segment-matrix column padding (>= B, sublane tile)
WROWS = 4 * C                           # packed weight-slab rows (sublane-aligned blocks)
WCOLS = K * C                           # packed weight-slab lane width

# The folded-lane layout reuses the input lane positions for the output; this holds because
# PAD == DIL*(K-1)/2 gives a "same"-length conv.
assert T_OUT == T, "kernel layout assumes 'same'-length dilated conv (T_OUT == T)"
assert C == H, "parameter-slab packing below assumes input_channel == hidden_channel"
assert B <= B_PAD, "segment matrix padded to 8 samples"


def _gn_mxu(t, gain, bias, seg, segT, inv_n):
    """GroupNorm(num_groups=1) per folded sample of a (rows, BT) tile, stats on the MXU.

    seg  : (BT, B_PAD) 0/1 sample-membership matrix (padded columns are all-zero)
    segT : (B_PAD, BT) its transpose (used to scatter per-sample stats back to lanes)
    """
    r = t.shape[0]
    # per-channel per-sample sums via MXU (replaces full-tile XLU reductions)
    stats_s = jnp.dot(t, seg, preferred_element_type=jnp.float32)          # (r, B_PAD)
    stats_ss = jnp.dot(t * t, seg, preferred_element_type=jnp.float32)     # (r, B_PAD)
    # tiny (r, 8) sublane reduces -> per-sample totals
    s = jnp.sum(stats_s, axis=0, keepdims=True)                            # (1, B_PAD)
    ss = jnp.sum(stats_ss, axis=0, keepdims=True)                          # (1, B_PAD)
    mean = s * inv_n
    var = jnp.maximum(ss * inv_n - mean * mean, 0.0)    # clamp: single-pass cancellation guard
    rstd = jax.lax.rsqrt(var + EPS)                      # EUP, tiny tile
    # scatter per-sample mean/rstd back to lanes (and across channels) with small matmuls;
    # padded seg rows are zero so the garbage stats of padded samples never propagate.
    mean_b = jnp.broadcast_to(mean, (r, B_PAD))
    rstd_b = jnp.broadcast_to(rstd, (r, B_PAD))
    mean_rows = jnp.dot(mean_b, segT, preferred_element_type=jnp.float32)  # (r, BT)
    rstd_rows = jnp.dot(rstd_b, segT, preferred_element_type=jnp.float32)  # (r, BT)
    return (t - mean_rows) * rstd_rows * gain + bias


def depthconv1d_kernel(alpha_ref, x_ref, w_ref, p_ref, seg_ref, segT_ref, out_ref):
    # --- scalars from SMEM (PReLU alphas) ---
    a1 = alpha_ref[0]
    a2 = alpha_ref[1]

    # --- unpack sublane-packed weight slab (all slices start at lane 0, rows at 8-offsets) ---
    # rows  0:16 , cols 0:H   -> fused [res_out; skip_out] weight  (2C, H)
    # rows 16:24 , cols 0:C   -> 1x1 conv1d weight                 (C, C)
    # rows 24:32 , cols 0:K*C -> im2col'd dense-masked grouped dilated conv weight (H, K*C)
    w_rs = w_ref[0:2 * C, 0:H]
    w1 = w_ref[2 * C:3 * C, 0:C]
    wd = w_ref[3 * C:4 * C, 0:K * C]

    # --- pre-broadcast channel-vector slab (rows, BT); row blocks at 8-offsets ---
    b1b = p_ref[0:C, :]
    g1b = p_ref[C:2 * C, :]
    be1b = p_ref[2 * C:3 * C, :]
    bdb = p_ref[3 * C:3 * C + H, :]
    g2b = p_ref[3 * C + H:3 * C + 2 * H, :]
    be2b = p_ref[3 * C + 2 * H:3 * C + 3 * H, :]
    brsb = p_ref[3 * C + 3 * H:3 * C + 3 * H + 2 * C, :]          # (2C, BT)

    seg = seg_ref[...]                                            # (BT, B_PAD)
    segT = segT_ref[...]                                          # (B_PAD, BT)

    x = x_ref[...]                                                # (C, B*T) batch-folded

    # ---- conv1d (1x1) + PReLU + per-sample GroupNorm(1, C) ----
    y = jnp.dot(w1, x, preferred_element_type=jnp.float32) + b1b
    y = jnp.where(y >= 0.0, y, y * a1)
    y = _gn_mxu(y, g1b, be1b, seg, segT, 1.0 / (C * T))

    # ---- grouped dilated conv as ONE im2col matmul ----
    # Tap k reads y shifted by d = k*DIL - PAD along time.  pltpu.roll wraps circularly
    # (across samples / array ends), so mask lanes whose per-sample time index t+d is
    # outside [0, T) -> reproduces the zero padding exactly (also stops batch leakage).
    lane = jax.lax.broadcasted_iota(jnp.int32, (1, BT), 1)
    t_in = lane % T
    windows = []
    for k in range(K):
        d = k * DIL - PAD
        if d == 0:
            windows.append(y)
        else:
            rolled = pltpu.roll(y, shift=(-d) % BT, axis=1)
            valid = (t_in + d >= 0) & (t_in + d < T)
            windows.append(jnp.where(valid, rolled, 0.0))
    im2col = jnp.concatenate(windows, axis=0)                     # (K*C, B*T)

    z = jnp.dot(wd, im2col, preferred_element_type=jnp.float32) + bdb
    z = jnp.where(z >= 0.0, z, z * a2)
    z = _gn_mxu(z, g2b, be2b, seg, segT, 1.0 / (H * T))

    # ---- fused res_out / skip_out: one matmul, one lane-dense (16, 128) store ----
    out_ref[...] = jnp.dot(w_rs, z, preferred_element_type=jnp.float32) + brsb


def pack_params(params):
    """One-time parameter packing (hoisted out of the per-call path)."""
    (w1, b1, a1, g1, be1, wd_dense, bd, a2, g2, be2, wr, br, ws, bs) = params

    # sublane-packed weight slab (32, 24)
    w_slab = jnp.zeros((WROWS, WCOLS), jnp.float32)
    w_slab = w_slab.at[0:2 * C, 0:H].set(jnp.concatenate([wr, ws], axis=0))
    w_slab = w_slab.at[2 * C:3 * C, 0:C].set(w1)
    # im2col weight layout: columns [k*C:(k+1)*C] = tap-k dense-masked (H, C) weight
    w_slab = w_slab.at[3 * C:4 * C, 0:K * C].set(
        jnp.transpose(wd_dense, (0, 2, 1)).reshape(H, K * C))

    # pre-broadcast channel vectors -> (64, BT) slab (pure VPU add/mul inside the kernel)
    ones_bt = jnp.ones((1, BT), jnp.float32)
    p_slab = jnp.concatenate(
        [v[:, None] * ones_bt for v in (b1, g1, be1, bd, g2, be2, br, bs)], axis=0)

    alphas = jnp.stack([a1, a2]).astype(jnp.float32)              # (2,) -> SMEM

    # 0/1 sample-membership matrices for the MXU GroupNorm stats (padded to 8 columns)
    lane = jnp.arange(BT)
    sample = lane // T
    seg = (sample[:, None] == jnp.arange(B_PAD)[None, :]).astype(jnp.float32)  # (BT, 8)
    segT = seg.T                                                               # (8, BT)

    return (alphas, w_slab, p_slab, seg, segT)


def depthconv1d(x, packed):
    """x: (B, C, T); packed = pack_params(params).  Returns (residual, skip)."""
    alphas, w_slab, p_slab, seg, segT = packed

    # fold batch into the lane axis: (B, C, T) -> (C, B*T)
    x2 = jnp.transpose(x, (1, 0, 2)).reshape(C, BT)

    out = pl.pallas_call(
        depthconv1d_kernel,
        out_shape=jax.ShapeDtypeStruct((2 * C, BT), jnp.float32),
        in_specs=[
            pl.BlockSpec(memory_space=pltpu.MemorySpace.SMEM),   # alphas (2,)
            pl.BlockSpec(memory_space=pltpu.MemorySpace.VMEM),   # x  (C, B*T)
            pl.BlockSpec(memory_space=pltpu.MemorySpace.VMEM),   # weight slab (32, 24)
            pl.BlockSpec(memory_space=pltpu.MemorySpace.VMEM),   # pre-broadcast vectors (64, BT)
            pl.BlockSpec(memory_space=pltpu.MemorySpace.VMEM),   # seg  (BT, 8)
            pl.BlockSpec(memory_space=pltpu.MemorySpace.VMEM),   # segT (8, BT)
        ],
        out_specs=pl.BlockSpec(memory_space=pltpu.MemorySpace.VMEM),
    )(alphas, x2, w_slab, p_slab, seg, segT)

    # split fused output and unfold the batch axis
    res = out[0:C].reshape(C, B, T_OUT).transpose(1, 0, 2)
    skip = out[C:2 * C].reshape(C, B, T_OUT).transpose(1, 0, 2)
    return res, skip


def reference(x, params):
    """Pure-JAX reference of DepthConv1d.forward (non-causal, skip=True)."""
    (w1, b1, a1, g1, be1, wd_dense, bd, a2, g2, be2, wr, br, ws, bs) = params
    y = jnp.einsum('oc,bct->bot', w1, x) + b1[None, :, None]
    y = jnp.where(y >= 0, y, y * a1)
    m = y.mean(axis=(1, 2), keepdims=True)
    v = ((y - m) ** 2).mean(axis=(1, 2), keepdims=True)
    y = (y - m) / jnp.sqrt(v + EPS) * g1[None, :, None] + be1[None, :, None]

    yp = jnp.pad(y, ((0, 0), (0, 0), (PAD, PAD)))
    z = jnp.zeros((x.shape[0], H, T_OUT), jnp.float32) + bd[None, :, None]
    for k in range(K):
        z = z + jnp.einsum('oc,bct->bot', wd_dense[:, :, k],
                           yp[:, :, k * DIL:k * DIL + T_OUT])
    z = jnp.where(z >= 0, z, z * a2)
    m2 = z.mean(axis=(1, 2), keepdims=True)
    v2 = ((z - m2) ** 2).mean(axis=(1, 2), keepdims=True)
    z = (z - m2) / jnp.sqrt(v2 + EPS) * g2[None, :, None] + be2[None, :, None]

    res = jnp.einsum('oh,bht->bot', wr, z) + br[None, :, None]
    skip = jnp.einsum('oh,bht->bot', ws, z) + bs[None, :, None]
    return res, skip


if __name__ == "__main__":
    key = jax.random.PRNGKey(0)
    ks = jax.random.split(key, 13)
    x = jax.random.normal(ks[0], (B, C, T), jnp.float32)

    # --- deterministic parameter init (shapes follow the nn.Module __init__) ---
    w1 = jax.random.normal(ks[1], (C, C), jnp.float32) * 0.2          # conv1d (1x1) weight
    b1 = jax.random.normal(ks[2], (C,), jnp.float32) * 0.1            # conv1d bias
    a1 = jnp.float32(0.25)                                            # PReLU1 alpha
    g1 = 1.0 + 0.1 * jax.random.normal(ks[3], (C,), jnp.float32)      # GroupNorm1 weight
    be1 = 0.1 * jax.random.normal(ks[4], (C,), jnp.float32)           # GroupNorm1 bias

    # dconv1d grouped weight, PyTorch shape (H, C // groups, K); expand to dense masked (H, C, K)
    wg = jax.random.normal(ks[5], (H, IN_PER_G, K), jnp.float32) * 0.2
    wd_dense = jnp.zeros((H, C, K), jnp.float32)
    for o in range(H):
        g = o // OUT_PER_G
        wd_dense = wd_dense.at[o, g * IN_PER_G:(g + 1) * IN_PER_G, :].set(wg[o])
    bd = jax.random.normal(ks[6], (H,), jnp.float32) * 0.1

    a2 = jnp.float32(0.1)                                             # PReLU2 alpha
    g2 = 1.0 + 0.1 * jax.random.normal(ks[7], (H,), jnp.float32)      # GroupNorm2 weight
    be2 = 0.1 * jax.random.normal(ks[8], (H,), jnp.float32)           # GroupNorm2 bias

    wr = jax.random.normal(ks[9], (C, H), jnp.float32) * 0.2          # res_out weight
    br = jax.random.normal(ks[10], (C,), jnp.float32) * 0.1
    ws = jax.random.normal(ks[11], (C, H), jnp.float32) * 0.2         # skip_out weight
    bs = jax.random.normal(ks[12], (C,), jnp.float32) * 0.1

    params = (w1, b1, a1, g1, be1, wd_dense, bd, a2, g2, be2, wr, br, ws, bs)

    # one-time parameter packing (hoisted out of the per-call / jitted path)
    packed = jax.block_until_ready(pack_params(params))

    fwd = jax.jit(depthconv1d)
    res, skip = fwd(x, packed)
    jax.block_until_ready((res, skip))

    ref_res, ref_skip = reference(x, params)
    assert jnp.allclose(res, ref_res, rtol=1e-4, atol=1e-4), "residual mismatch"
    assert jnp.allclose(skip, ref_skip, rtol=1e-4, atol=1e-4), "skip mismatch"
    print("KERNEL_OK")
</pallas_src>

<mosaic_0001>
module attributes {stable_mosaic.version = 11 : i64} {
  func.func @depthconv1d_kernel(%arg0: memref<2xf32, #tpu.memory_space<smem>>, %arg1: memref<8x128xf32, #tpu.memory_space<vmem>>, %arg2: memref<32x24xf32, #tpu.memory_space<vmem>>, %arg3: memref<64x128xf32, #tpu.memory_space<vmem>>, %arg4: memref<128x8xf32, #tpu.memory_space<vmem>>, %arg5: memref<8x128xf32, #tpu.memory_space<vmem>>, %arg6: memref<16x128xf32, #tpu.memory_space<vmem>>) attributes {dimension_semantics = [], scalar_prefetch = 0 : i64, scratch_operands = 0 : i64, tpu.core_type = #tpu.core_type<tc>} {
    %c0 = arith.constant 0 : index
    %0 = memref.load %arg0[%c0] : memref<2xf32, #tpu.memory_space<smem>>
    %c1 = arith.constant 1 : index
    %1 = memref.load %arg0[%c1] : memref<2xf32, #tpu.memory_space<smem>>
    %c0_0 = arith.constant 0 : index
    %c0_1 = arith.constant 0 : index
    %2 = vector.load %arg2[%c0_0, %c0_1] : memref<32x24xf32, #tpu.memory_space<vmem>>, vector<16x8xf32>
    %c16 = arith.constant 16 : index
    %c0_2 = arith.constant 0 : index
    %3 = vector.load %arg2[%c16, %c0_2] : memref<32x24xf32, #tpu.memory_space<vmem>>, vector<8x8xf32>
    %c24 = arith.constant 24 : index
    %c0_3 = arith.constant 0 : index
    %4 = vector.load %arg2[%c24, %c0_3] : memref<32x24xf32, #tpu.memory_space<vmem>>, vector<8x24xf32>
    %c0_4 = arith.constant 0 : index
    %c0_5 = arith.constant 0 : index
    %5 = vector.load %arg3[%c0_4, %c0_5] : memref<64x128xf32, #tpu.memory_space<vmem>>, vector<8x128xf32>
    %c8 = arith.constant 8 : index
    %c0_6 = arith.constant 0 : index
    %6 = vector.load %arg3[%c8, %c0_6] : memref<64x128xf32, #tpu.memory_space<vmem>>, vector<8x128xf32>
    %c16_7 = arith.constant 16 : index
    %c0_8 = arith.constant 0 : index
    %7 = vector.load %arg3[%c16_7, %c0_8] : memref<64x128xf32, #tpu.memory_space<vmem>>, vector<8x128xf32>
    %c24_9 = arith.constant 24 : index
    %c0_10 = arith.constant 0 : index
    %8 = vector.load %arg3[%c24_9, %c0_10] : memref<64x128xf32, #tpu.memory_space<vmem>>, vector<8x128xf32>
    %c32 = arith.constant 32 : index
    %c0_11 = arith.constant 0 : index
    %9 = vector.load %arg3[%c32, %c0_11] : memref<64x128xf32, #tpu.memory_space<vmem>>, vector<8x128xf32>
    %c40 = arith.constant 40 : index
    %c0_12 = arith.constant 0 : index
    %10 = vector.load %arg3[%c40, %c0_12] : memref<64x128xf32, #tpu.memory_space<vmem>>, vector<8x128xf32>
    %c48 = arith.constant 48 : index
    %c0_13 = arith.constant 0 : index
    %11 = vector.load %arg3[%c48, %c0_13] : memref<64x128xf32, #tpu.memory_space<vmem>>, vector<16x128xf32>
    %c0_14 = arith.constant 0 : index
    %c0_15 = arith.constant 0 : index
    %12 = vector.load %arg4[%c0_14, %c0_15] : memref<128x8xf32, #tpu.memory_space<vmem>>, vector<128x8xf32>
    %c0_16 = arith.constant 0 : index
    %c0_17 = arith.constant 0 : index
    %13 = vector.load %arg5[%c0_16, %c0_17] : memref<8x128xf32, #tpu.memory_space<vmem>>, vector<8x128xf32>
    %c0_18 = arith.constant 0 : index
    %c0_19 = arith.constant 0 : index
    %14 = vector.load %arg1[%c0_18, %c0_19] : memref<8x128xf32, #tpu.memory_space<vmem>>, vector<8x128xf32>
    %cst = arith.constant dense<0.000000e+00> : vector<8x128xf32>
    %15 = tpu.matmul %3, %14, %cst {dimension_numbers = #tpu.dot_dimension_numbers<[1], [0], [0], [1], [0, 0, 1, 1], [], []>} : vector<8x8xf32>, vector<8x128xf32>, vector<8x128xf32> -> vector<8x128xf32>
    %16 = arith.addf %15, %5 : vector<8x128xf32>
    %cst_20 = arith.constant 0.000000e+00 : f32
    %17 = vector.broadcast %cst_20 : f32 to vector<8x128xf32>
    %18 = arith.cmpf oge, %16, %17 : vector<8x128xf32>
    %19 = vector.broadcast %0 : f32 to vector<8x128xf32>
    %20 = arith.mulf %16, %19 : vector<8x128xf32>
    %21 = arith.select %18, %16, %20 : vector<8x128xi1>, vector<8x128xf32>
    %cst_21 = arith.constant dense<0.000000e+00> : vector<8x8xf32>
    %22 = tpu.matmul %21, %12, %cst_21 {dimension_numbers = #tpu.dot_dimension_numbers<[1], [0], [0], [1], [0, 0, 1, 1], [], []>} : vector<8x128xf32>, vector<128x8xf32>, vector<8x8xf32> -> vector<8x8xf32>
    %23 = arith.mulf %21, %21 : vector<8x128xf32>
    %cst_22 = arith.constant dense<0.000000e+00> : vector<8x8xf32>
    %24 = tpu.matmul %23, %12, %cst_22 {dimension_numbers = #tpu.dot_dimension_numbers<[1], [0], [0], [1], [0, 0, 1, 1], [], []>} : vector<8x128xf32>, vector<128x8xf32>, vector<8x8xf32> -> vector<8x8xf32>
    %cst_23 = arith.constant dense<0.000000e+00> : vector<8xf32>
    %25 = vector.multi_reduction <add>, %22, %cst_23 [0] : vector<8x8xf32> to vector<8xf32>
    %26 = vector.shape_cast %25 : vector<8xf32> to vector<1x8xf32>
    %cst_24 = arith.constant dense<0.000000e+00> : vector<8xf32>
    %27 = vector.multi_reduction <add>, %24, %cst_24 [0] : vector<8x8xf32> to vector<8xf32>
    %28 = vector.shape_cast %27 : vector<8xf32> to vector<1x8xf32>
    %cst_25 = arith.constant 0.001953125 : f32
    %29 = vector.broadcast %cst_25 : f32 to vector<1x8xf32>
    %30 = arith.mulf %26, %29 : vector<1x8xf32>
    %cst_26 = arith.constant 0.001953125 : f32
    %31 = vector.broadcast %cst_26 : f32 to vector<1x8xf32>
    %32 = arith.mulf %28, %31 : vector<1x8xf32>
    %33 = arith.mulf %30, %30 : vector<1x8xf32>
    %34 = arith.subf %32, %33 : vector<1x8xf32>
    %cst_27 = arith.constant 0.000000e+00 : f32
    %35 = vector.broadcast %cst_27 : f32 to vector<1x8xf32>
    %36 = arith.maximumf %34, %35 : vector<1x8xf32>
    %cst_28 = arith.constant 9.99999993E-9 : f32
    %37 = vector.broadcast %cst_28 : f32 to vector<1x8xf32>
    %38 = arith.addf %36, %37 : vector<1x8xf32>
    %39 = math.rsqrt %38 : vector<1x8xf32>
    %40 = vector.shape_cast %30 : vector<1x8xf32> to vector<1x8xf32>
    %41 = vector.broadcast %40 : vector<1x8xf32> to vector<8x8xf32>
    %42 = vector.shape_cast %39 : vector<1x8xf32> to vector<1x8xf32>
    %43 = vector.broadcast %42 : vector<1x8xf32> to vector<8x8xf32>
    %cst_29 = arith.constant dense<0.000000e+00> : vector<8x128xf32>
    %44 = tpu.matmul %41, %13, %cst_29 {dimension_numbers = #tpu.dot_dimension_numbers<[1], [0], [0], [1], [0, 0, 1, 1], [], []>} : vector<8x8xf32>, vector<8x128xf32>, vector<8x128xf32> -> vector<8x128xf32>
    %cst_30 = arith.constant dense<0.000000e+00> : vector<8x128xf32>
    %45 = tpu.matmul %43, %13, %cst_30 {dimension_numbers = #tpu.dot_dimension_numbers<[1], [0], [0], [1], [0, 0, 1, 1], [], []>} : vector<8x8xf32>, vector<8x128xf32>, vector<8x128xf32> -> vector<8x128xf32>
    %46 = arith.subf %21, %44 : vector<8x128xf32>
    %47 = arith.mulf %46, %45 : vector<8x128xf32>
    %48 = arith.mulf %47, %6 : vector<8x128xf32>
    %49 = arith.addf %48, %7 : vector<8x128xf32>
    %50 = tpu.iota {dimensions = array<i32: 1>} : vector<1x128xi32>
    %c64_i32 = arith.constant 64 : i32
    %c0_i32 = arith.constant 0 : i32
    %51 = arith.cmpi eq, %c64_i32, %c0_i32 : i32
    %c1_i32 = arith.constant 1 : i32
    %52 = arith.select %51, %c1_i32, %c64_i32 : i32
    %53 = vector.broadcast %52 : i32 to vector<1x128xi32>
    %54 = arith.remsi %50, %53 : vector<1x128xi32>
    %c0_i32_31 = arith.constant 0 : i32
    %55 = vector.broadcast %c0_i32_31 : i32 to vector<1x128xi32>
    %56 = arith.cmpi ne, %54, %55 : vector<1x128xi32>
    %c0_i32_32 = arith.constant 0 : i32
    %57 = vector.broadcast %c0_i32_32 : i32 to vector<1x128xi32>
    %58 = arith.cmpi slt, %54, %57 : vector<1x128xi32>
    %c0_i32_33 = arith.constant 0 : i32
    %59 = arith.cmpi slt, %52, %c0_i32_33 : i32
    %60 = vector.broadcast %59 : i1 to vector<1x128xi1>
    %61 = vector.broadcast %60 : vector<1x128xi1> to vector<1x128xi1>
    %62 = arith.xori %58, %61 : vector<1x128xi1>
    %63 = arith.andi %62, %56 : vector<1x128xi1>
    %64 = vector.broadcast %52 : i32 to vector<1x128xi32>
    %65 = arith.addi %54, %64 : vector<1x128xi32>
    %66 = arith.select %63, %65, %54 : vector<1x128xi1>, vector<1x128xi32>
    %c2_i32 = arith.constant 2 : i32
    %67 = tpu.dynamic_rotate %49 by %c2_i32 dim 1 : vector<8x128xf32>, i32 -> vector<8x128xf32>
    %c-2_i32 = arith.constant -2 : i32
    %68 = vector.broadcast %c-2_i32 : i32 to vector<1x128xi32>
    %69 = arith.addi %66, %68 : vector<1x128xi32>
    %c0_i32_34 = arith.constant 0 : i32
    %70 = vector.broadcast %c0_i32_34 : i32 to vector<1x128xi32>
    %71 = arith.cmpi sge, %69, %70 : vector<1x128xi32>
    %c-2_i32_35 = arith.constant -2 : i32
    %72 = vector.broadcast %c-2_i32_35 : i32 to vector<1x128xi32>
    %73 = arith.addi %66, %72 : vector<1x128xi32>
    %c64_i32_36 = arith.constant 64 : i32
    %74 = vector.broadcast %c64_i32_36 : i32 to vector<1x128xi32>
    %75 = arith.cmpi slt, %73, %74 : vector<1x128xi32>
    %76 = arith.andi %71, %75 : vector<1x128xi1>
    %cst_37 = arith.constant 0.000000e+00 : f32
    %77 = vector.shape_cast %76 : vector<1x128xi1> to vector<1x128xi1>
    %78 = vector.broadcast %77 : vector<1x128xi1> to vector<8x128xi1>
    %79 = vector.broadcast %cst_37 : f32 to vector<8x128xf32>
    %80 = arith.select %78, %67, %79 : vector<8x128xi1>, vector<8x128xf32>
    %c126_i32 = arith.constant 126 : i32
    %81 = tpu.dynamic_rotate %49 by %c126_i32 dim 1 : vector<8x128xf32>, i32 -> vector<8x128xf32>
    %c2_i32_38 = arith.constant 2 : i32
    %82 = vector.broadcast %c2_i32_38 : i32 to vector<1x128xi32>
    %83 = arith.addi %66, %82 : vector<1x128xi32>
    %c0_i32_39 = arith.constant 0 : i32
    %84 = vector.broadcast %c0_i32_39 : i32 to vector<1x128xi32>
    %85 = arith.cmpi sge, %83, %84 : vector<1x128xi32>
    %c2_i32_40 = arith.constant 2 : i32
    %86 = vector.broadcast %c2_i32_40 : i32 to vector<1x128xi32>
    %87 = arith.addi %66, %86 : vector<1x128xi32>
    %c64_i32_41 = arith.constant 64 : i32
    %88 = vector.broadcast %c64_i32_41 : i32 to vector<1x128xi32>
    %89 = arith.cmpi slt, %87, %88 : vector<1x128xi32>
    %90 = arith.andi %85, %89 : vector<1x128xi1>
    %cst_42 = arith.constant 0.000000e+00 : f32
    %91 = vector.shape_cast %90 : vector<1x128xi1> to vector<1x128xi1>
    %92 = vector.broadcast %91 : vector<1x128xi1> to vector<8x128xi1>
    %93 = vector.broadcast %cst_42 : f32 to vector<8x128xf32>
    %94 = arith.select %92, %81, %93 : vector<8x128xi1>, vector<8x128xf32>
    %95 = tpu.concatenate %80, %49, %94 in 0 : vector<8x128xf32>, vector<8x128xf32>, vector<8x128xf32> -> vector<24x128xf32>
    %cst_43 = arith.constant dense<0.000000e+00> : vector<8x128xf32>
    %96 = tpu.matmul %4, %95, %cst_43 {dimension_numbers = #tpu.dot_dimension_numbers<[1], [0], [0], [1], [0, 0, 1, 1], [], []>} : vector<8x24xf32>, vector<24x128xf32>, vector<8x128xf32> -> vector<8x128xf32>
    %97 = arith.addf %96, %8 : vector<8x128xf32>
    %cst_44 = arith.constant 0.000000e+00 : f32
    %98 = vector.broadcast %cst_44 : f32 to vector<8x128xf32>
    %99 = arith.cmpf oge, %97, %98 : vector<8x128xf32>
    %100 = vector.broadcast %1 : f32 to vector<8x128xf32>
    %101 = arith.mulf %97, %100 : vector<8x128xf32>
    %102 = arith.select %99, %97, %101 : vector<8x128xi1>, vector<8x128xf32>
    %cst_45 = arith.constant dense<0.000000e+00> : vector<8x8xf32>
    %103 = tpu.matmul %102, %12, %cst_45 {dimension_numbers = #tpu.dot_dimension_numbers<[1], [0], [0], [1], [0, 0, 1, 1], [], []>} : vector<8x128xf32>, vector<128x8xf32>, vector<8x8xf32> -> vector<8x8xf32>
    %104 = arith.mulf %102, %102 : vector<8x128xf32>
    %cst_46 = arith.constant dense<0.000000e+00> : vector<8x8xf32>
    %105 = tpu.matmul %104, %12, %cst_46 {dimension_numbers = #tpu.dot_dimension_numbers<[1], [0], [0], [1], [0, 0, 1, 1], [], []>} : vector<8x128xf32>, vector<128x8xf32>, vector<8x8xf32> -> vector<8x8xf32>
    %cst_47 = arith.constant dense<0.000000e+00> : vector<8xf32>
    %106 = vector.multi_reduction <add>, %103, %cst_47 [0] : vector<8x8xf32> to vector<8xf32>
    %107 = vector.shape_cast %106 : vector<8xf32> to vector<1x8xf32>
    %cst_48 = arith.constant dense<0.000000e+00> : vector<8xf32>
    %108 = vector.multi_reduction <add>, %105, %cst_48 [0] : vector<8x8xf32> to vector<8xf32>
    %109 = vector.shape_cast %108 : vector<8xf32> to vector<1x8xf32>
    %cst_49 = arith.constant 0.001953125 : f32
    %110 = vector.broadcast %cst_49 : f32 to vector<1x8xf32>
    %111 = arith.mulf %107, %110 : vector<1x8xf32>
    %cst_50 = arith.constant 0.001953125 : f32
    %112 = vector.broadcast %cst_50 : f32 to vector<1x8xf32>
    %113 = arith.mulf %109, %112 : vector<1x8xf32>
    %114 = arith.mulf %111, %111 : vector<1x8xf32>
    %115 = arith.subf %113, %114 : vector<1x8xf32>
    %cst_51 = arith.constant 0.000000e+00 : f32
    %116 = vector.broadcast %cst_51 : f32 to vector<1x8xf32>
    %117 = arith.maximumf %115, %116 : vector<1x8xf32>
    %cst_52 = arith.constant 9.99999993E-9 : f32
    %118 = vector.broadcast %cst_52 : f32 to vector<1x8xf32>
    %119 = arith.addf %117, %118 : vector<1x8xf32>
    %120 = math.rsqrt %119 : vector<1x8xf32>
    %121 = vector.shape_cast %111 : vector<1x8xf32> to vector<1x8xf32>
    %122 = vector.broadcast %121 : vector<1x8xf32> to vector<8x8xf32>
    %123 = vector.shape_cast %120 : vector<1x8xf32> to vector<1x8xf32>
    %124 = vector.broadcast %123 : vector<1x8xf32> to vector<8x8xf32>
    %cst_53 = arith.constant dense<0.000000e+00> : vector<8x128xf32>
    %125 = tpu.matmul %122, %13, %cst_53 {dimension_numbers = #tpu.dot_dimension_numbers<[1], [0], [0], [1], [0, 0, 1, 1], [], []>} : vector<8x8xf32>, vector<8x128xf32>, vector<8x128xf32> -> vector<8x128xf32>
    %cst_54 = arith.constant dense<0.000000e+00> : vector<8x128xf32>
    %126 = tpu.matmul %124, %13, %cst_54 {dimension_numbers = #tpu.dot_dimension_numbers<[1], [0], [0], [1], [0, 0, 1, 1], [], []>} : vector<8x8xf32>, vector<8x128xf32>, vector<8x128xf32> -> vector<8x128xf32>
    %127 = arith.subf %102, %125 : vector<8x128xf32>
    %128 = arith.mulf %127, %126 : vector<8x128xf32>
    %129 = arith.mulf %128, %9 : vector<8x128xf32>
    %130 = arith.addf %129, %10 : vector<8x128xf32>
    %cst_55 = arith.constant dense<0.000000e+00> : vector<16x128xf32>
    %131 = tpu.matmul %2, %130, %cst_55 {dimension_numbers = #tpu.dot_dimension_numbers<[1], [0], [0], [1], [0, 0, 1, 1], [], []>} : vector<16x8xf32>, vector<8x128xf32>, vector<16x128xf32> -> vector<16x128xf32>
    %132 = arith.addf %131, %11 : vector<16x128xf32>
    %c0_56 = arith.constant 0 : index
    %c0_57 = arith.constant 0 : index
    %133 = vector.load %arg6[%c0_56, %c0_57] : memref<16x128xf32, #tpu.memory_space<vmem>>, vector<16x128xf32>
    tpu.vector_store %arg6[%c0_56, %c0_57], %132 {strides = array<i32>} : memref<16x128xf32, #tpu.memory_space<vmem>>, vector<16x128xf32>,
    return
  }
}

</mosaic_0001>

<llo_original>
// kernel: depthconv1d.1
$region0: #{depthconv1d.1}
  #allocation0 [shape = 'u32[]', space=smem, size = 0x4, offset = 0x4, fixed_abs, tag = 'smem constant byte address 0x4 - core index']
  #allocation1 [shape = 'u32[144,128]{1,0:T(1,128)}', space=vmem, size = 0x12000, scoped, tag = 'internal scratch']
  %s0 = inlined_call_operand.vmem [shape: f32[2], index: 0, kind: input, shape index: {}]
  %s1 = inlined_call_operand.vmem [shape: f32[8,128], index: 1, kind: input, shape index: {}]
  %s2 = inlined_call_operand.vmem [shape: f32[32,24], index: 2, kind: input, shape index: {}]
  %s3 = inlined_call_operand.vmem [shape: f32[64,128], index: 3, kind: input, shape index: {}]
  %s4 = inlined_call_operand.vmem [shape: f32[128,8], index: 4, kind: input, shape index: {}]
  %s5 = inlined_call_operand.vmem [shape: f32[8,128], index: 5, kind: input, shape index: {}]
  %s6 = inlined_call_operand.vmem [shape: f32[16,128], index: 6, kind: output, shape index: {}]
  %s7 = sld [smem:[#allocation0]]
  $region38: #{depthconv1d.1} parent=0
    _
  %s9 = ssub.s32 1, %s7
  %s10 = scalar_select 0, %s9, %s7
  $region1: #{depthconv1d.1} parent=0
    #allocation2 [shape = 'u8[512]{0}', space=smem, size = 0x200, scoped, tag = 'input window, operand 0, single buffered']
    #allocation3 [shape = 's32[1]{0}', space=sflag, size = 0x4, scoped, tag = 'scoped memory for depthconv1d.1']
    %11 = vsyncpa [#allocation3], 0
    // Predicated region
    $region2: #{depthconv1d.1} parent=1 // pred_check
      _
    $region3: #{depthconv1d.1} parent=1 // pred_check_branch
      %13 = sbr.rel (0) target = $region5
    $region4: #{depthconv1d.1} parent=1 // pred_region
      %s15 = ssub.s32 16, 16
      %16 = vsyncadd [#allocation3], %s15
      %s18 = sshll.u32 %s0, 4
      %s19 = int_to_ptr.vmem [resolvable:$true] %s18
      %21 = dma.vmem_to_smem %s19, 16, [#allocation2], [#allocation3]
    $region5: #{depthconv1d.1} parent=1 // pred_fallthru
      _
    // Predicated region
    $region6: #{depthconv1d.1} parent=1 // pred_check
      _
    $region7: #{depthconv1d.1} parent=1 // pred_check_branch
      %23 = sbr.rel (0) target = $region9
    $region8: #{depthconv1d.1} parent=1 // pred_region
      _
    $region9: #{depthconv1d.1} parent=1 // pred_fallthru
      _
    // Predicated region
    $region10: #{depthconv1d.1} parent=1 // pred_check
      _
    $region11: #{depthconv1d.1} parent=1 // pred_check_branch
      %25 = sbr.rel (0) target = $region13
    $region12: #{depthconv1d.1} parent=1 // pred_region
      _
    $region13: #{depthconv1d.1} parent=1 // pred_fallthru
      _
    // Predicated region
    $region14: #{depthconv1d.1} parent=1 // pred_check
      _
    $region15: #{depthconv1d.1} parent=1 // pred_check_branch
      %27 = sbr.rel (0) target = $region17
    $region16: #{depthconv1d.1} parent=1 // pred_region
      _
    $region17: #{depthconv1d.1} parent=1 // pred_fallthru
      _
    // Predicated region
    $region18: #{depthconv1d.1} parent=1 // pred_check
      _
    $region19: #{depthconv1d.1} parent=1 // pred_check_branch
      %29 = sbr.rel (0) target = $region21
    $region20: #{depthconv1d.1} parent=1 // pred_region
      _
    $region21: #{depthconv1d.1} parent=1 // pred_fallthru
      _
    // Predicated region
    $region22: #{depthconv1d.1} parent=1 // pred_check
      _
    $region23: #{depthconv1d.1} parent=1 // pred_check_branch
      %31 = sbr.rel (0) target = $region25
    $region24: #{depthconv1d.1} parent=1 // pred_region
      _
    $region25: #{depthconv1d.1} parent=1 // pred_fallthru
      _
    // Predicated region
    $region26: #{depthconv1d.1} parent=1 // pred_check
      _
    $region27: #{depthconv1d.1} parent=1 // pred_check_branch
      %33 = sbr.rel (0) target = $region29
    $region28: #{depthconv1d.1} parent=1 // pred_region
      %34 = dma.done [#allocation3], 16
    $region29: #{depthconv1d.1} parent=1 // pred_fallthru
      _
    %35 = sfence
    %s36 = sld [smem:[#allocation2]]
    %s37 = sld [smem:[#allocation2 + $0x1]]
    %v38 = vld [vmem:[%s2] sm:$0xff]
    %v39 = vld [vmem:[%s2 + $0x8] sm:$0xff]
    %v40 = vld [vmem:[%s2 + $0x10] sm:$0xff]
    %v41 = vld [vmem:[%s2 + $0x18] sm:$0xff]
    %v42 = vld [vmem:[%s3] sm:$0xff]
    %v43 = vld [vmem:[%s3 + $0x8] sm:$0xff]
    %v44 = vld [vmem:[%s3 + $0x10] sm:$0xff]
    %v45 = vld [vmem:[%s3 + $0x18] sm:$0xff]
    %v46 = vld [vmem:[%s3 + $0x20] sm:$0xff]
    %v47 = vld [vmem:[%s3 + $0x28] sm:$0xff]
    %v48 = vld [vmem:[%s3 + $0x30] sm:$0xff]
    %v49 = vld [vmem:[%s3 + $0x38] sm:$0xff]
    %v50 = vld [vmem:[%s4] sm:$0xff]
    %v51 = vld [vmem:[%s4 + $0x8] sm:$0xff]
    %v52 = vld [vmem:[%s4 + $0x10] sm:$0xff]
    %v53 = vld [vmem:[%s4 + $0x18] sm:$0xff]
    %v54 = vld [vmem:[%s4 + $0x20] sm:$0xff]
    %v55 = vld [vmem:[%s4 + $0x28] sm:$0xff]
    %v56 = vld [vmem:[%s4 + $0x30] sm:$0xff]
    %v57 = vld [vmem:[%s4 + $0x38] sm:$0xff]
    %v58 = vld [vmem:[%s4 + $0x40] sm:$0xff]
    %v59 = vld [vmem:[%s4 + $0x48] sm:$0xff]
    %v60 = vld [vmem:[%s4 + $0x50] sm:$0xff]
    %v61 = vld [vmem:[%s4 + $0x58] sm:$0xff]
    %v62 = vld [vmem:[%s4 + $0x60] sm:$0xff]
    %v63 = vld [vmem:[%s4 + $0x68] sm:$0xff]
    %v64 = vld [vmem:[%s4 + $0x70] sm:$0xff]
    %v65 = vld [vmem:[%s4 + $0x78] sm:$0xff]
    %v66 = vld [vmem:[%s5] sm:$0xff]
    %v67 = vld [vmem:[%s1] sm:$0xff]
    %vm68 = vcmask 64512
    %v70 = vsel %vm68, %v40, 0
    %72 = vmatprep.subr.mxu0 0.0
    %73 = vmatpush1.msra.mxu0 %v67
    %74 = vmatprep.subr.mxu0 0.0
    %75 = vmatpush1.msra.mxu0 0.0
    %76 = vmatprep.subr.mxu0 0.0
    %77 = vmatpush1.msra.mxu0 0.0
    %78 = vmatprep.subr.mxu0 0.0
    %79 = vmatpush1.msra.mxu0 0.0
    %80 = vmatprep.subr.mxu0 0.0
    %81 = vmatpush1.msra.mxu0 0.0
    %82 = vmatprep.subr.mxu0 0.0
    %83 = vmatpush1.msra.mxu0 0.0
    %84 = vmatprep.subr.mxu0 0.0
    %85 = vmatpush1.msra.mxu0 0.0
    %86 = vmatprep.subr.mxu0 0.0
    %87 = vmatpush1.msra.mxu0 0.0
    %88 = vmatprep.subr.mxu0 0.0
    %89 = vmatpush1.msra.mxu0 0.0
    %90 = vmatprep.subr.mxu0 0.0
    %91 = vmatpush1.msra.mxu0 0.0
    %92 = vmatprep.subr.mxu0 0.0
    %93 = vmatpush1.msra.mxu0 0.0
    %94 = vmatprep.subr.mxu0 0.0
    %95 = vmatpush1.msra.mxu0 0.0
    %96 = vmatprep.subr.mxu0 0.0
    %97 = vmatpush1.msra.mxu0 0.0
    %98 = vmatprep.subr.mxu0 0.0
    %99 = vmatpush1.msra.mxu0 0.0
    %100 = vmatprep.subr.mxu0 0.0
    %101 = vmatpush1.msra.mxu0 0.0
    %102 = vmatprep.subr.mxu0 0.0
    %103 = vmatpush1.msra.mxu0 0.0
    %104 = vmatprep.subr.mxu0 0.0
    %105 = vmatpush1.msra.mxu0 0.0
    %106 = vmatprep.subr.mxu0 0.0
    %107 = vmatpush1.msra.mxu0 0.0
    %108 = vmatprep.subr.mxu0 0.0
    %109 = vmatpush1.msra.mxu0 0.0
    %110 = vmatprep.subr.mxu0 0.0
    %111 = vmatpush1.msra.mxu0 0.0
    %112 = vmatprep.subr.mxu0 0.0
    %113 = vmatpush1.msra.mxu0 0.0
    %114 = vmatprep.subr.mxu0 0.0
    %115 = vmatpush1.msra.mxu0 0.0
    %116 = vmatprep.subr.mxu0 0.0
    %117 = vmatpush1.msra.mxu0 0.0
    %118 = vmatprep.subr.mxu0 0.0
    %119 = vmatpush1.msra.mxu0 0.0
    %120 = vmatprep.subr.mxu0 0.0
    %121 = vmatpush1.msra.mxu0 0.0
    %122 = vmatprep.subr.mxu0 0.0
    %123 = vmatpush1.msra.mxu0 0.0
    %124 = vmatprep.subr.mxu0 0.0
    %125 = vmatpush1.msra.mxu0 0.0
    %126 = vmatprep.subr.mxu0 0.0
    %127 = vmatpush1.msra.mxu0 0.0
    %128 = vmatprep.subr.mxu0 0.0
    %129 = vmatpush1.msra.mxu0 0.0
    %130 = vmatprep.subr.mxu0 0.0
    %131 = vmatpush1.msra.mxu0 0.0
    %132 = vmatprep.subr.mxu0 0.0
    %133 = vmatpush1.msra.mxu0 0.0
    %134 = vmatprep.subr.mxu0 0.0
    %135 = vmatpush1.msra.mxu0 0.0
    %136 = vmatprep.mubr.f32.mxu0 0.0
    %137 = vmatmul.mubr.f32.gmra.mrb[0].mxu0 %v70
    %v138 = vpop.f32.mrb[0].mxu0
    %v139 = vadd.f32 %v42, %v138
    %v140 = vpop.f32.mrb[0].mxu0
    %141 = vdwg.mxu0
    %vm142 = vcmp.ge.f32.partialorder %v139, 0.0
    %v143 = vstv %s36
    %v144 = vmul.f32 %v139, %v143
    %v145 = vsel %vm142, %v139, %v144
    %146 = vmatprep.subr.mxu0 0.0
    %147 = vmatpush1.msra.mxu0 %v50
    %148 = vmatprep.subr.mxu0 0.0
    %149 = vmatpush1.msra.mxu0 %v51
    %150 = vmatprep.subr.mxu0 0.0
    %151 = vmatpush1.msra.mxu0 %v52
    %152 = vmatprep.subr.mxu0 0.0
    %153 = vmatpush1.msra.mxu0 %v53
    %154 = vmatprep.subr.mxu0 0.0
    %155 = vmatpush1.msra.mxu0 %v54
    %156 = vmatprep.subr.mxu0 0.0
    %157 = vmatpush1.msra.mxu0 %v55
    %158 = vmatprep.subr.mxu0 0.0
    %159 = vmatpush1.msra.mxu0 %v56
    %160 = vmatprep.subr.mxu0 0.0
    %161 = vmatpush1.msra.mxu0 %v57
    %162 = vmatprep.subr.mxu0 0.0
    %163 = vmatpush1.msra.mxu0 %v58
    %164 = vmatprep.subr.mxu0 0.0
    %165 = vmatpush1.msra.mxu0 %v59
    %166 = vmatprep.subr.mxu0 0.0
    %167 = vmatpush1.msra.mxu0 %v60
    %168 = vmatprep.subr.mxu0 0.0
    %169 = vmatpush1.msra.mxu0 %v61
    %170 = vmatprep.subr.mxu0 0.0
    %171 = vmatpush1.msra.mxu0 %v62
    %172 = vmatprep.subr.mxu0 0.0
    %173 = vmatpush1.msra.mxu0 %v63
    %174 = vmatprep.subr.mxu0 0.0
    %175 = vmatpush1.msra.mxu0 %v64
    %176 = vmatprep.subr.mxu0 0.0
    %177 = vmatpush1.msra.mxu0 %v65
    %178 = vmatprep.subr.mxu0 0.0
    %179 = vmatpush1.msra.mxu0 0.0
    %180 = vmatprep.subr.mxu0 0.0
    %181 = vmatpush1.msra.mxu0 0.0
    %182 = vmatprep.subr.mxu0 0.0
    %183 = vmatpush1.msra.mxu0 0.0
    %184 = vmatprep.subr.mxu0 0.0
    %185 = vmatpush1.msra.mxu0 0.0
    %186 = vmatprep.subr.mxu0 0.0
    %187 = vmatpush1.msra.mxu0 0.0
    %188 = vmatprep.subr.mxu0 0.0
    %189 = vmatpush1.msra.mxu0 0.0
    %190 = vmatprep.subr.mxu0 0.0
    %191 = vmatpush1.msra.mxu0 0.0
    %192 = vmatprep.subr.mxu0 0.0
    %193 = vmatpush1.msra.mxu0 0.0
    %194 = vmatprep.subr.mxu0 0.0
    %195 = vmatpush1.msra.mxu0 0.0
    %196 = vmatprep.subr.mxu0 0.0
    %197 = vmatpush1.msra.mxu0 0.0
    %198 = vmatprep.subr.mxu0 0.0
    %199 = vmatpush1.msra.mxu0 0.0
    %200 = vmatprep.subr.mxu0 0.0
    %201 = vmatpush1.msra.mxu0 0.0
    %202 = vmatprep.subr.mxu0 0.0
    %203 = vmatpush1.msra.mxu0 0.0
    %204 = vmatprep.subr.mxu0 0.0
    %205 = vmatpush1.msra.mxu0 0.0
    %206 = vmatprep.subr.mxu0 0.0
    %207 = vmatpush1.msra.mxu0 0.0
    %208 = vmatprep.subr.mxu0 0.0
    %209 = vmatpush1.msra.mxu0 0.0
    %210 = vmatprep.mubr.f32.mxu0 0.0
    %211 = vmatmul.mubr.f32.gmra.mrb[0].mxu0 %v145
    %v212 = vpop.f32.mrb[0].mxu0
    %v213 = vadd.f32 0.0, %v212
    %v214 = vpop.f32.mrb[0].mxu0
    %215 = vdwg.mxu0
    %v216 = vmul.f32 %v145, %v145
    %217 = vmatprep.subr.mxu0 0.0
    %218 = vmatpush1.msra.mxu0 %v50
    %219 = vmatprep.subr.mxu0 0.0
    %220 = vmatpush1.msra.mxu0 %v51
    %221 = vmatprep.subr.mxu0 0.0
    %222 = vmatpush1.msra.mxu0 %v52
    %223 = vmatprep.subr.mxu0 0.0
    %224 = vmatpush1.msra.mxu0 %v53
    %225 = vmatprep.subr.mxu0 0.0
    %226 = vmatpush1.msra.mxu0 %v54
    %227 = vmatprep.subr.mxu0 0.0
    %228 = vmatpush1.msra.mxu0 %v55
    %229 = vmatprep.subr.mxu0 0.0
    %230 = vmatpush1.msra.mxu0 %v56
    %231 = vmatprep.subr.mxu0 0.0
    %232 = vmatpush1.msra.mxu0 %v57
    %233 = vmatprep.subr.mxu0 0.0
    %234 = vmatpush1.msra.mxu0 %v58
    %235 = vmatprep.subr.mxu0 0.0
    %236 = vmatpush1.msra.mxu0 %v59
    %237 = vmatprep.subr.mxu0 0.0
    %238 = vmatpush1.msra.mxu0 %v60
    %239 = vmatprep.subr.mxu0 0.0
    %240 = vmatpush1.msra.mxu0 %v61
    %241 = vmatprep.subr.mxu0 0.0
    %242 = vmatpush1.msra.mxu0 %v62
    %243 = vmatprep.subr.mxu0 0.0
    %244 = vmatpush1.msra.mxu0 %v63
    %245 = vmatprep.subr.mxu0 0.0
    %246 = vmatpush1.msra.mxu0 %v64
    %247 = vmatprep.subr.mxu0 0.0
    %248 = vmatpush1.msra.mxu0 %v65
    %249 = vmatprep.subr.mxu0 0.0
    %250 = vmatpush1.msra.mxu0 0.0
    %251 = vmatprep.subr.mxu0 0.0
    %252 = vmatpush1.msra.mxu0 0.0
    %253 = vmatprep.subr.mxu0 0.0
    %254 = vmatpush1.msra.mxu0 0.0
    %255 = vmatprep.subr.mxu0 0.0
    %256 = vmatpush1.msra.mxu0 0.0
    %257 = vmatprep.subr.mxu0 0.0
    %258 = vmatpush1.msra.mxu0 0.0
    %259 = vmatprep.subr.mxu0 0.0
    %260 = vmatpush1.msra.mxu0 0.0
    %261 = vmatprep.subr.mxu0 0.0
    %262 = vmatpush1.msra.mxu0 0.0
    %263 = vmatprep.subr.mxu0 0.0
    %264 = vmatpush1.msra.mxu0 0.0
    %265 = vmatprep.subr.mxu0 0.0
    %266 = vmatpush1.msra.mxu0 0.0
    %267 = vmatprep.subr.mxu0 0.0
    %268 = vmatpush1.msra.mxu0 0.0
    %269 = vmatprep.subr.mxu0 0.0
    %270 = vmatpush1.msra.mxu0 0.0
    %271 = vmatprep.subr.mxu0 0.0
    %272 = vmatpush1.msra.mxu0 0.0
    %273 = vmatprep.subr.mxu0 0.0
    %274 = vmatpush1.msra.mxu0 0.0
    %275 = vmatprep.subr.mxu0 0.0
    %276 = vmatpush1.msra.mxu0 0.0
    %277 = vmatprep.subr.mxu0 0.0
    %278 = vmatpush1.msra.mxu0 0.0
    %279 = vmatprep.subr.mxu0 0.0
    %280 = vmatpush1.msra.mxu0 0.0
    %281 = vmatprep.mubr.f32.mxu0 0.0
    %282 = vmatmul.mubr.f32.gmra.mrb[0].mxu0 %v216
    %v283 = vpop.f32.mrb[0].mxu0
    %v284 = vadd.f32 0.0, %v283
    %v285 = vpop.f32.mrb[0].mxu0
    %286 = vdwg.mxu0
    %v287 = vsel %vm68, %v213, 0.0
    %v288 = vrot.slane %v287, 4
    %v289 = vadd.f32 %v287, %v288
    %v290 = vrot.slane %v289, 2
    %v291 = vadd.f32 %v289, %v290
    %v292 = vrot.slane %v291, 1
    %v293 = vadd.f32 %v291, %v292
    %v294 = vsel %vm68, %v284, 0.0
    %v295 = vrot.slane %v294, 4
    %v296 = vadd.f32 %v294, %v295
    %v297 = vrot.slane %v296, 2
    %v298 = vadd.f32 %v296, %v297
    %v299 = vrot.slane %v298, 1
    %v300 = vadd.f32 %v298, %v299
    %v301 = vmul.f32 %v293, 0.001953125
    %v302 = vmul.f32 %v300, 0.001953125
    %v303 = vmul.f32 %v301, %v301
    %v304 = vsub.f32 %v302, %v303
    %v305 = vmax.f32 %v304, 0.0
    %v306 = vadd.f32 %v305, 1e-08
    %v307 = vrsqrt.pop %v306
    %v309 = vsel %vm68, %v301, 0
    %311 = vmatprep.subr.mxu0 0.0
    %312 = vmatpush1.msra.mxu0 %v66
    %313 = vmatprep.subr.mxu0 0.0
    %314 = vmatpush1.msra.mxu0 0.0
    %315 = vmatprep.subr.mxu0 0.0
    %316 = vmatpush1.msra.mxu0 0.0
    %317 = vmatprep.subr.mxu0 0.0
    %318 = vmatpush1.msra.mxu0 0.0
    %319 = vmatprep.subr.mxu0 0.0
    %320 = vmatpush1.msra.mxu0 0.0
    %321 = vmatprep.subr.mxu0 0.0
    %322 = vmatpush1.msra.mxu0 0.0
    %323 = vmatprep.subr.mxu0 0.0
    %324 = vmatpush1.msra.mxu0 0.0
    %325 = vmatprep.subr.mxu0 0.0
    %326 = vmatpush1.msra.mxu0 0.0
    %327 = vmatprep.subr.mxu0 0.0
    %328 = vmatpush1.msra.mxu0 0.0
    %329 = vmatprep.subr.mxu0 0.0
    %330 = vmatpush1.msra.mxu0 0.0
    %331 = vmatprep.subr.mxu0 0.0
    %332 = vmatpush1.msra.mxu0 0.0
    %333 = vmatprep.subr.mxu0 0.0
    %334 = vmatpush1.msra.mxu0 0.0
    %335 = vmatprep.subr.mxu0 0.0
    %336 = vmatpush1.msra.mxu0 0.0
    %337 = vmatprep.subr.mxu0 0.0
    %338 = vmatpush1.msra.mxu0 0.0
    %339 = vmatprep.subr.mxu0 0.0
    %340 = vmatpush1.msra.mxu0 0.0
    %341 = vmatprep.subr.mxu0 0.0
    %342 = vmatpush1.msra.mxu0 0.0
    %343 = vmatprep.subr.mxu0 0.0
    %344 = vmatpush1.msra.mxu0 0.0
    %345 = vmatprep.subr.mxu0 0.0
    %346 = vmatpush1.msra.mxu0 0.0
    %347 = vmatprep.subr.mxu0 0.0
    %348 = vmatpush1.msra.mxu0 0.0
    %349 = vmatprep.subr.mxu0 0.0
    %350 = vmatpush1.msra.mxu0 0.0
    %351 = vmatprep.subr.mxu0 0.0
    %352 = vmatpush1.msra.mxu0 0.0
    %353 = vmatprep.subr.mxu0 0.0
    %354 = vmatpush1.msra.mxu0 0.0
    %355 = vmatprep.subr.mxu0 0.0
    %356 = vmatpush1.msra.mxu0 0.0
    %357 = vmatprep.subr.mxu0 0.0
    %358 = vmatpush1.msra.mxu0 0.0
    %359 = vmatprep.subr.mxu0 0.0
    %360 = vmatpush1.msra.mxu0 0.0
    %361 = vmatprep.subr.mxu0 0.0
    %362 = vmatpush1.msra.mxu0 0.0
    %363 = vmatprep.subr.mxu0 0.0
    %364 = vmatpush1.msra.mxu0 0.0
    %365 = vmatprep.subr.mxu0 0.0
    %366 = vmatpush1.msra.mxu0 0.0
    %367 = vmatprep.subr.mxu0 0.0
    %368 = vmatpush1.msra.mxu0 0.0
    %369 = vmatprep.subr.mxu0 0.0
    %370 = vmatpush1.msra.mxu0 0.0
    %371 = vmatprep.subr.mxu0 0.0
    %372 = vmatpush1.msra.mxu0 0.0
    %373 = vmatprep.subr.mxu0 0.0
    %374 = vmatpush1.msra.mxu0 0.0
    %375 = vmatprep.mubr.f32.mxu0 0.0
    %376 = vmatmul.mubr.f32.gmra.mrb[0].mxu0 %v309
    %v377 = vpop.f32.mrb[0].mxu0
    %v378 = vadd.f32 0.0, %v377
    %v379 = vpop.f32.mrb[0].mxu0
    %380 = vdwg.mxu0
    %v382 = vsel %vm68, %v307, 0
    %384 = vmatprep.subr.mxu0 0.0
    %385 = vmatpush1.msra.mxu0 %v66
    %386 = vmatprep.subr.mxu0 0.0
    %387 = vmatpush1.msra.mxu0 0.0
    %388 = vmatprep.subr.mxu0 0.0
    %389 = vmatpush1.msra.mxu0 0.0
    %390 = vmatprep.subr.mxu0 0.0
    %391 = vmatpush1.msra.mxu0 0.0
    %392 = vmatprep.subr.mxu0 0.0
    %393 = vmatpush1.msra.mxu0 0.0
    %394 = vmatprep.subr.mxu0 0.0
    %395 = vmatpush1.msra.mxu0 0.0
    %396 = vmatprep.subr.mxu0 0.0
    %397 = vmatpush1.msra.mxu0 0.0
    %398 = vmatprep.subr.mxu0 0.0
    %399 = vmatpush1.msra.mxu0 0.0
    %400 = vmatprep.subr.mxu0 0.0
    %401 = vmatpush1.msra.mxu0 0.0
    %402 = vmatprep.subr.mxu0 0.0
    %403 = vmatpush1.msra.mxu0 0.0
    %404 = vmatprep.subr.mxu0 0.0
    %405 = vmatpush1.msra.mxu0 0.0
    %406 = vmatprep.subr.mxu0 0.0
    %407 = vmatpush1.msra.mxu0 0.0
    %408 = vmatprep.subr.mxu0 0.0
    %409 = vmatpush1.msra.mxu0 0.0
    %410 = vmatprep.subr.mxu0 0.0
    %411 = vmatpush1.msra.mxu0 0.0
    %412 = vmatprep.subr.mxu0 0.0
    %413 = vmatpush1.msra.mxu0 0.0
    %414 = vmatprep.subr.mxu0 0.0
    %415 = vmatpush1.msra.mxu0 0.0
    %416 = vmatprep.subr.mxu0 0.0
    %417 = vmatpush1.msra.mxu0 0.0
    %418 = vmatprep.subr.mxu0 0.0
    %419 = vmatpush1.msra.mxu0 0.0
    %420 = vmatprep.subr.mxu0 0.0
    %421 = vmatpush1.msra.mxu0 0.0
    %422 = vmatprep.subr.mxu0 0.0
    %423 = vmatpush1.msra.mxu0 0.0
    %424 = vmatprep.subr.mxu0 0.0
    %425 = vmatpush1.msra.mxu0 0.0
    %426 = vmatprep.subr.mxu0 0.0
    %427 = vmatpush1.msra.mxu0 0.0
    %428 = vmatprep.subr.mxu0 0.0
    %429 = vmatpush1.msra.mxu0 0.0
    %430 = vmatprep.subr.mxu0 0.0
    %431 = vmatpush1.msra.mxu0 0.0
    %432 = vmatprep.subr.mxu0 0.0
    %433 = vmatpush1.msra.mxu0 0.0
    %434 = vmatprep.subr.mxu0 0.0
    %435 = vmatpush1.msra.mxu0 0.0
    %436 = vmatprep.subr.mxu0 0.0
    %437 = vmatpush1.msra.mxu0 0.0
    %438 = vmatprep.subr.mxu0 0.0
    %439 = vmatpush1.msra.mxu0 0.0
    %440 = vmatprep.subr.mxu0 0.0
    %441 = vmatpush1.msra.mxu0 0.0
    %442 = vmatprep.subr.mxu0 0.0
    %443 = vmatpush1.msra.mxu0 0.0
    %444 = vmatprep.subr.mxu0 0.0
    %445 = vmatpush1.msra.mxu0 0.0
    %446 = vmatprep.subr.mxu0 0.0
    %447 = vmatpush1.msra.mxu0 0.0
    %448 = vmatprep.mubr.f32.mxu0 0.0
    %449 = vmatmul.mubr.f32.gmra.mrb[0].mxu0 %v382
    %v450 = vpop.f32.mrb[0].mxu0
    %v451 = vadd.f32 0.0, %v450
    %v452 = vpop.f32.mrb[0].mxu0
    %453 = vdwg.mxu0
    %v454 = vsub.f32 %v145, %v378
    %v455 = vmul.f32 %v454, %v451
    %v456 = vmul.f32 %v455, %v43
    %v457 = vadd.f32 %v456, %v44
    %v458 = vlaneseq
    %v459 = vand.u32 %v458, 127
    %vm460 = vcmp.lt.s32.totalorder %v459, 0
    %v461 = vsub.s32 0, %v459
    %v462 = vsel %vm460, %v461, %v459
    %v463 = vshrl.u32 %v462, 6
    %v464 = vand.u32 %v462, 63
    %v465 = vsub.s32 0, %v464
    %v466 = vsel %vm460, %v465, %v464
    %vm467 = vcmp.ne.s32.totalorder %v466, 0
    %vm468 = vcmp.lt.s32.totalorder %v466, 0
    %vm469 = vmand %vm468, %vm467
    %v470 = vadd.s32 %v466, 64
    %v471 = vsel %vm469, %v470, %v466
    %472 = vrot.lane.b32.xlu0 %v457, 2
    %v473 = vpop.permute.xlu0 %472
    %v474 = vadd.s32 %v471, 4294967294
    %vm475 = vcmp.ge.s32.totalorder %v474, 0
    %vm476 = vcmp.lt.s32.totalorder %v474, 64
    %vm477 = vmand %vm475, %vm476
    %v478 = vsel %vm477, 1, 0
    %vm479 = vcmp.eq.s32.totalorder %v478, 1
    %v480 = vsel %vm479, %v473, 0.0
    %481 = vrot.lane.b32.xlu0 %v457, 126
    %v482 = vpop.permute.xlu0 %481
    %v483 = vadd.s32 %v471, 2
    %vm484 = vcmp.ge.s32.totalorder %v483, 0
    %vm485 = vcmp.lt.s32.totalorder %v483, 64
    %vm486 = vmand %vm484, %vm485
    %v487 = vsel %vm486, 1, 0
    %vm488 = vcmp.eq.s32.totalorder %v487, 1
    %v489 = vsel %vm488, %v482, 0.0
    %vm490 = vcmask 195584
    %v492 = vsel %vm490, %v41, 0
    %494 = vmatprep.subr.mxu0 0.0
    %495 = vmatpush1.msra.mxu0 %v480
    %496 = vmatprep.subr.mxu0 0.0
    %497 = vmatpush1.msra.mxu0 %v457
    %498 = vmatprep.subr.mxu0 0.0
    %499 = vmatpush1.msra.mxu0 %v489
    %500 = vmatprep.subr.mxu0 0.0
    %501 = vmatpush1.msra.mxu0 0.0
    %502 = vmatprep.subr.mxu0 0.0
    %503 = vmatpush1.msra.mxu0 0.0
    %504 = vmatprep.subr.mxu0 0.0
    %505 = vmatpush1.msra.mxu0 0.0
    %506 = vmatprep.subr.mxu0 0.0
    %507 = vmatpush1.msra.mxu0 0.0
    %508 = vmatprep.subr.mxu0 0.0
    %509 = vmatpush1.msra.mxu0 0.0
    %510 = vmatprep.subr.mxu0 0.0
    %511 = vmatpush1.msra.mxu0 0.0
    %512 = vmatprep.subr.mxu0 0.0
    %513 = vmatpush1.msra.mxu0 0.0
    %514 = vmatprep.subr.mxu0 0.0
    %515 = vmatpush1.msra.mxu0 0.0
    %516 = vmatprep.subr.mxu0 0.0
    %517 = vmatpush1.msra.mxu0 0.0
    %518 = vmatprep.subr.mxu0 0.0
    %519 = vmatpush1.msra.mxu0 0.0
    %520 = vmatprep.subr.mxu0 0.0
    %521 = vmatpush1.msra.mxu0 0.0
    %522 = vmatprep.subr.mxu0 0.0
    %523 = vmatpush1.msra.mxu0 0.0
    %524 = vmatprep.subr.mxu0 0.0
    %525 = vmatpush1.msra.mxu0 0.0
    %526 = vmatprep.subr.mxu0 0.0
    %527 = vmatpush1.msra.mxu0 0.0
    %528 = vmatprep.subr.mxu0 0.0
    %529 = vmatpush1.msra.mxu0 0.0
    %530 = vmatprep.subr.mxu0 0.0
    %531 = vmatpush1.msra.mxu0 0.0
    %532 = vmatprep.subr.mxu0 0.0
    %533 = vmatpush1.msra.mxu0 0.0
    %534 = vmatprep.subr.mxu0 0.0
    %535 = vmatpush1.msra.mxu0 0.0
    %536 = vmatprep.subr.mxu0 0.0
    %537 = vmatpush1.msra.mxu0 0.0
    %538 = vmatprep.subr.mxu0 0.0
    %539 = vmatpush1.msra.mxu0 0.0
    %540 = vmatprep.subr.mxu0 0.0
    %541 = vmatpush1.msra.mxu0 0.0
    %542 = vmatprep.subr.mxu0 0.0
    %543 = vmatpush1.msra.mxu0 0.0
    %544 = vmatprep.subr.mxu0 0.0
    %545 = vmatpush1.msra.mxu0 0.0
    %546 = vmatprep.subr.mxu0 0.0
    %547 = vmatpush1.msra.mxu0 0.0
    %548 = vmatprep.subr.mxu0 0.0
    %549 = vmatpush1.msra.mxu0 0.0
    %550 = vmatprep.subr.mxu0 0.0
    %551 = vmatpush1.msra.mxu0 0.0
    %552 = vmatprep.subr.mxu0 0.0
    %553 = vmatpush1.msra.mxu0 0.0
    %554 = vmatprep.subr.mxu0 0.0
    %555 = vmatpush1.msra.mxu0 0.0
    %556 = vmatprep.subr.mxu0 0.0
    %557 = vmatpush1.msra.mxu0 0.0
    %558 = vmatprep.mubr.f32.mxu0 0.0
    %559 = vmatmul.mubr.f32.gmra.mrb[0].mxu0 %v492
    %v560 = vpop.f32.mrb[0].mxu0
    %v561 = vadd.f32 %v45, %v560
    %v562 = vpop.f32.mrb[0].mxu0
    %563 = vdwg.mxu0
    %vm564 = vcmp.ge.f32.partialorder %v561, 0.0
    %v565 = vstv %s37
    %v566 = vmul.f32 %v561, %v565
    %v567 = vsel %vm564, %v561, %v566
    %568 = vmatprep.subr.mxu0 0.0
    %569 = vmatpush1.msra.mxu0 %v50
    %570 = vmatprep.subr.mxu0 0.0
    %571 = vmatpush1.msra.mxu0 %v51
    %572 = vmatprep.subr.mxu0 0.0
    %573 = vmatpush1.msra.mxu0 %v52
    %574 = vmatprep.subr.mxu0 0.0
    %575 = vmatpush1.msra.mxu0 %v53
    %576 = vmatprep.subr.mxu0 0.0
    %577 = vmatpush1.msra.mxu0 %v54
    %578 = vmatprep.subr.mxu0 0.0
    %579 = vmatpush1.msra.mxu0 %v55
    %580 = vmatprep.subr.mxu0 0.0
    %581 = vmatpush1.msra.mxu0 %v56
    %582 = vmatprep.subr.mxu0 0.0
    %583 = vmatpush1.msra.mxu0 %v57
    %584 = vmatprep.subr.mxu0 0.0
    %585 = vmatpush1.msra.mxu0 %v58
    %586 = vmatprep.subr.mxu0 0.0
    %587 = vmatpush1.msra.mxu0 %v59
    %588 = vmatprep.subr.mxu0 0.0
    %589 = vmatpush1.msra.mxu0 %v60
    %590 = vmatprep.subr.mxu0 0.0
    %591 = vmatpush1.msra.mxu0 %v61
    %592 = vmatprep.subr.mxu0 0.0
    %593 = vmatpush1.msra.mxu0 %v62
    %594 = vmatprep.subr.mxu0 0.0
    %595 = vmatpush1.msra.mxu0 %v63
    %596 = vmatprep.subr.mxu0 0.0
    %597 = vmatpush1.msra.mxu0 %v64
    %598 = vmatprep.subr.mxu0 0.0
    %599 = vmatpush1.msra.mxu0 %v65
    %600 = vmatprep.subr.mxu0 0.0
    %601 = vmatpush1.msra.mxu0 0.0
    %602 = vmatprep.subr.mxu0 0.0
    %603 = vmatpush1.msra.mxu0 0.0
    %604 = vmatprep.subr.mxu0 0.0
    %605 = vmatpush1.msra.mxu0 0.0
    %606 = vmatprep.subr.mxu0 0.0
    %607 = vmatpush1.msra.mxu0 0.0
    %608 = vmatprep.subr.mxu0 0.0
    %609 = vmatpush1.msra.mxu0 0.0
    %610 = vmatprep.subr.mxu0 0.0
    %611 = vmatpush1.msra.mxu0 0.0
    %612 = vmatprep.subr.mxu0 0.0
    %613 = vmatpush1.msra.mxu0 0.0
    %614 = vmatprep.subr.mxu0 0.0
    %615 = vmatpush1.msra.mxu0 0.0
    %616 = vmatprep.subr.mxu0 0.0
    %617 = vmatpush1.msra.mxu0 0.0
    %618 = vmatprep.subr.mxu0 0.0
    %619 = vmatpush1.msra.mxu0 0.0
    %620 = vmatprep.subr.mxu0 0.0
    %621 = vmatpush1.msra.mxu0 0.0
    %622 = vmatprep.subr.mxu0 0.0
    %623 = vmatpush1.msra.mxu0 0.0
    %624 = vmatprep.subr.mxu0 0.0
    %625 = vmatpush1.msra.mxu0 0.0
    %626 = vmatprep.subr.mxu0 0.0
    %627 = vmatpush1.msra.mxu0 0.0
    %628 = vmatprep.subr.mxu0 0.0
    %629 = vmatpush1.msra.mxu0 0.0
    %630 = vmatprep.subr.mxu0 0.0
    %631 = vmatpush1.msra.mxu0 0.0
    %632 = vmatprep.mubr.f32.mxu0 0.0
    %633 = vmatmul.mubr.f32.gmra.mrb[0].mxu0 %v567
    %v634 = vpop.f32.mrb[0].mxu0
    %v635 = vadd.f32 0.0, %v634
    %v636 = vpop.f32.mrb[0].mxu0
    %637 = vdwg.mxu0
    %v638 = vmul.f32 %v567, %v567
    %639 = vmatprep.subr.mxu0 0.0
    %640 = vmatpush1.msra.mxu0 %v50
    %641 = vmatprep.subr.mxu0 0.0
    %642 = vmatpush1.msra.mxu0 %v51
    %643 = vmatprep.subr.mxu0 0.0
    %644 = vmatpush1.msra.mxu0 %v52
    %645 = vmatprep.subr.mxu0 0.0
    %646 = vmatpush1.msra.mxu0 %v53
    %647 = vmatprep.subr.mxu0 0.0
    %648 = vmatpush1.msra.mxu0 %v54
    %649 = vmatprep.subr.mxu0 0.0
    %650 = vmatpush1.msra.mxu0 %v55
    %651 = vmatprep.subr.mxu0 0.0
    %652 = vmatpush1.msra.mxu0 %v56
    %653 = vmatprep.subr.mxu0 0.0
    %654 = vmatpush1.msra.mxu0 %v57
    %655 = vmatprep.subr.mxu0 0.0
    %656 = vmatpush1.msra.mxu0 %v58
    %657 = vmatprep.subr.mxu0 0.0
    %658 = vmatpush1.msra.mxu0 %v59
    %659 = vmatprep.subr.mxu0 0.0
    %660 = vmatpush1.msra.mxu0 %v60
    %661 = vmatprep.subr.mxu0 0.0
    %662 = vmatpush1.msra.mxu0 %v61
    %663 = vmatprep.subr.mxu0 0.0
    %664 = vmatpush1.msra.mxu0 %v62
    %665 = vmatprep.subr.mxu0 0.0
    %666 = vmatpush1.msra.mxu0 %v63
    %667 = vmatprep.subr.mxu0 0.0
    %668 = vmatpush1.msra.mxu0 %v64
    %669 = vmatprep.subr.mxu0 0.0
    %670 = vmatpush1.msra.mxu0 %v65
    %671 = vmatprep.subr.mxu0 0.0
    %672 = vmatpush1.msra.mxu0 0.0
    %673 = vmatprep.subr.mxu0 0.0
    %674 = vmatpush1.msra.mxu0 0.0
    %675 = vmatprep.subr.mxu0 0.0
    %676 = vmatpush1.msra.mxu0 0.0
    %677 = vmatprep.subr.mxu0 0.0
    %678 = vmatpush1.msra.mxu0 0.0
    %679 = vmatprep.subr.mxu0 0.0
    %680 = vmatpush1.msra.mxu0 0.0
    %681 = vmatprep.subr.mxu0 0.0
    %682 = vmatpush1.msra.mxu0 0.0
    %683 = vmatprep.subr.mxu0 0.0
    %684 = vmatpush1.msra.mxu0 0.0
    %685 = vmatprep.subr.mxu0 0.0
    %686 = vmatpush1.msra.mxu0 0.0
    %687 = vmatprep.subr.mxu0 0.0
    %688 = vmatpush1.msra.mxu0 0.0
    %689 = vmatprep.subr.mxu0 0.0
    %690 = vmatpush1.msra.mxu0 0.0
    %691 = vmatprep.subr.mxu0 0.0
    %692 = vmatpush1.msra.mxu0 0.0
    %693 = vmatprep.subr.mxu0 0.0
    %694 = vmatpush1.msra.mxu0 0.0
    %695 = vmatprep.subr.mxu0 0.0
    %696 = vmatpush1.msra.mxu0 0.0
    %697 = vmatprep.subr.mxu0 0.0
    %698 = vmatpush1.msra.mxu0 0.0
    %699 = vmatprep.subr.mxu0 0.0
    %700 = vmatpush1.msra.mxu0 0.0
    %701 = vmatprep.subr.mxu0 0.0
    %702 = vmatpush1.msra.mxu0 0.0
    %703 = vmatprep.mubr.f32.mxu0 0.0
    %704 = vmatmul.mubr.f32.gmra.mrb[0].mxu0 %v638
    %v705 = vpop.f32.mrb[0].mxu0
    %v706 = vadd.f32 0.0, %v705
    %v707 = vpop.f32.mrb[0].mxu0
    %708 = vdwg.mxu0
    %v709 = vsel %vm68, %v635, 0.0
    %v710 = vrot.slane %v709, 4
    %v711 = vadd.f32 %v709, %v710
    %v712 = vrot.slane %v711, 2
    %v713 = vadd.f32 %v711, %v712
    %v714 = vrot.slane %v713, 1
    %v715 = vadd.f32 %v713, %v714
    %v716 = vsel %vm68, %v706, 0.0
    %v717 = vrot.slane %v716, 4
    %v718 = vadd.f32 %v716, %v717
    %v719 = vrot.slane %v718, 2
    %v720 = vadd.f32 %v718, %v719
    %v721 = vrot.slane %v720, 1
    %v722 = vadd.f32 %v720, %v721
    %v723 = vmul.f32 %v715, 0.001953125
    %v724 = vmul.f32 %v722, 0.001953125
    %v725 = vmul.f32 %v723, %v723
    %v726 = vsub.f32 %v724, %v725
    %v727 = vmax.f32 %v726, 0.0
    %v728 = vadd.f32 %v727, 1e-08
    %v729 = vrsqrt.pop %v728
    %v731 = vsel %vm68, %v723, 0
    %733 = vmatprep.subr.mxu0 0.0
    %734 = vmatpush1.msra.mxu0 %v66
    %735 = vmatprep.subr.mxu0 0.0
    %736 = vmatpush1.msra.mxu0 0.0
    %737 = vmatprep.subr.mxu0 0.0
    %738 = vmatpush1.msra.mxu0 0.0
    %739 = vmatprep.subr.mxu0 0.0
    %740 = vmatpush1.msra.mxu0 0.0
    %741 = vmatprep.subr.mxu0 0.0
    %742 = vmatpush1.msra.mxu0 0.0
    %743 = vmatprep.subr.mxu0 0.0
    %744 = vmatpush1.msra.mxu0 0.0
    %745 = vmatprep.subr.mxu0 0.0
    %746 = vmatpush1.msra.mxu0 0.0
    %747 = vmatprep.subr.mxu0 0.0
    %748 = vmatpush1.msra.mxu0 0.0
    %749 = vmatprep.subr.mxu0 0.0
    %750 = vmatpush1.msra.mxu0 0.0
    %751 = vmatprep.subr.mxu0 0.0
    %752 = vmatpush1.msra.mxu0 0.0
    %753 = vmatprep.subr.mxu0 0.0
    %754 = vmatpush1.msra.mxu0 0.0
    %755 = vmatprep.subr.mxu0 0.0
    %756 = vmatpush1.msra.mxu0 0.0
    %757 = vmatprep.subr.mxu0 0.0
    %758 = vmatpush1.msra.mxu0 0.0
    %759 = vmatprep.subr.mxu0 0.0
    %760 = vmatpush1.msra.mxu0 0.0
    %761 = vmatprep.subr.mxu0 0.0
    %762 = vmatpush1.msra.mxu0 0.0
    %763 = vmatprep.subr.mxu0 0.0
    %764 = vmatpush1.msra.mxu0 0.0
    %765 = vmatprep.subr.mxu0 0.0
    %766 = vmatpush1.msra.mxu0 0.0
    %767 = vmatprep.subr.mxu0 0.0
    %768 = vmatpush1.msra.mxu0 0.0
    %769 = vmatprep.subr.mxu0 0.0
    %770 = vmatpush1.msra.mxu0 0.0
    %771 = vmatprep.subr.mxu0 0.0
    %772 = vmatpush1.msra.mxu0 0.0
    %773 = vmatprep.subr.mxu0 0.0
    %774 = vmatpush1.msra.mxu0 0.0
    %775 = vmatprep.subr.mxu0 0.0
    %776 = vmatpush1.msra.mxu0 0.0
    %777 = vmatprep.subr.mxu0 0.0
    %778 = vmatpush1.msra.mxu0 0.0
    %779 = vmatprep.subr.mxu0 0.0
    %780 = vmatpush1.msra.mxu0 0.0
    %781 = vmatprep.subr.mxu0 0.0
    %782 = vmatpush1.msra.mxu0 0.0
    %783 = vmatprep.subr.mxu0 0.0
    %784 = vmatpush1.msra.mxu0 0.0
    %785 = vmatprep.subr.mxu0 0.0
    %786 = vmatpush1.msra.mxu0 0.0
    %787 = vmatprep.subr.mxu0 0.0
    %788 = vmatpush1.msra.mxu0 0.0
    %789 = vmatprep.subr.mxu0 0.0
    %790 = vmatpush1.msra.mxu0 0.0
    %791 = vmatprep.subr.mxu0 0.0
    %792 = vmatpush1.msra.mxu0 0.0
    %793 = vmatprep.subr.mxu0 0.0
    %794 = vmatpush1.msra.mxu0 0.0
    %795 = vmatprep.subr.mxu0 0.0
    %796 = vmatpush1.msra.mxu0 0.0
    %797 = vmatprep.mubr.f32.mxu0 0.0
    %798 = vmatmul.mubr.f32.gmra.mrb[0].mxu0 %v731
    %v799 = vpop.f32.mrb[0].mxu0
    %v800 = vadd.f32 0.0, %v799
    %v801 = vpop.f32.mrb[0].mxu0
    %802 = vdwg.mxu0
    %v804 = vsel %vm68, %v729, 0
    %806 = vmatprep.subr.mxu0 0.0
    %807 = vmatpush1.msra.mxu0 %v66
    %808 = vmatprep.subr.mxu0 0.0
    %809 = vmatpush1.msra.mxu0 0.0
    %810 = vmatprep.subr.mxu0 0.0
    %811 = vmatpush1.msra.mxu0 0.0
    %812 = vmatprep.subr.mxu0 0.0
    %813 = vmatpush1.msra.mxu0 0.0
    %814 = vmatprep.subr.mxu0 0.0
    %815 = vmatpush1.msra.mxu0 0.0
    %816 = vmatprep.subr.mxu0 0.0
    %817 = vmatpush1.msra.mxu0 0.0
    %818 = vmatprep.subr.mxu0 0.0
    %819 = vmatpush1.msra.mxu0 0.0
    %820 = vmatprep.subr.mxu0 0.0
    %821 = vmatpush1.msra.mxu0 0.0
    %822 = vmatprep.subr.mxu0 0.0
    %823 = vmatpush1.msra.mxu0 0.0
    %824 = vmatprep.subr.mxu0 0.0
    %825 = vmatpush1.msra.mxu0 0.0
    %826 = vmatprep.subr.mxu0 0.0
    %827 = vmatpush1.msra.mxu0 0.0
    %828 = vmatprep.subr.mxu0 0.0
    %829 = vmatpush1.msra.mxu0 0.0
    %830 = vmatprep.subr.mxu0 0.0
    %831 = vmatpush1.msra.mxu0 0.0
    %832 = vmatprep.subr.mxu0 0.0
    %833 = vmatpush1.msra.mxu0 0.0
    %834 = vmatprep.subr.mxu0 0.0
    %835 = vmatpush1.msra.mxu0 0.0
    %836 = vmatprep.subr.mxu0 0.0
    %837 = vmatpush1.msra.mxu0 0.0
    %838 = vmatprep.subr.mxu0 0.0
    %839 = vmatpush1.msra.mxu0 0.0
    %840 = vmatprep.subr.mxu0 0.0
    %841 = vmatpush1.msra.mxu0 0.0
    %842 = vmatprep.subr.mxu0 0.0
    %843 = vmatpush1.msra.mxu0 0.0
    %844 = vmatprep.subr.mxu0 0.0
    %845 = vmatpush1.msra.mxu0 0.0
    %846 = vmatprep.subr.mxu0 0.0
    %847 = vmatpush1.msra.mxu0 0.0
    %848 = vmatprep.subr.mxu0 0.0
    %849 = vmatpush1.msra.mxu0 0.0
    %850 = vmatprep.subr.mxu0 0.0
    %851 = vmatpush1.msra.mxu0 0.0
    %852 = vmatprep.subr.mxu0 0.0
    %853 = vmatpush1.msra.mxu0 0.0
    %854 = vmatprep.subr.mxu0 0.0
    %855 = vmatpush1.msra.mxu0 0.0
    %856 = vmatprep.subr.mxu0 0.0
    %857 = vmatpush1.msra.mxu0 0.0
    %858 = vmatprep.subr.mxu0 0.0
    %859 = vmatpush1.msra.mxu0 0.0
    %860 = vmatprep.subr.mxu0 0.0
    %861 = vmatpush1.msra.mxu0 0.0
    %862 = vmatprep.subr.mxu0 0.0
    %863 = vmatpush1.msra.mxu0 0.0
    %864 = vmatprep.subr.mxu0 0.0
    %865 = vmatpush1.msra.mxu0 0.0
    %866 = vmatprep.subr.mxu0 0.0
    %867 = vmatpush1.msra.mxu0 0.0
    %868 = vmatprep.subr.mxu0 0.0
    %869 = vmatpush1.msra.mxu0 0.0
    %870 = vmatprep.mubr.f32.mxu0 0.0
    %871 = vmatmul.mubr.f32.gmra.mrb[0].mxu0 %v804
    %v872 = vpop.f32.mrb[0].mxu0
    %v873 = vadd.f32 0.0, %v872
    %v874 = vpop.f32.mrb[0].mxu0
    %875 = vdwg.mxu0
    %v876 = vsub.f32 %v567, %v800
    %v877 = vmul.f32 %v876, %v873
    %v878 = vmul.f32 %v877, %v46
    %v879 = vadd.f32 %v878, %v47
    %v881 = vsel %vm68, %v38, 0
    %v884 = vsel %vm68, %v39, 0
    %886 = vmatprep.subr.mxu0 0.0
    %887 = vmatpush1.msra.mxu0 %v879
    %888 = vmatprep.subr.mxu0 0.0
    %889 = vmatpush1.msra.mxu0 0.0
    %890 = vmatprep.subr.mxu0 0.0
    %891 = vmatpush1.msra.mxu0 0.0
    %892 = vmatprep.subr.mxu0 0.0
    %893 = vmatpush1.msra.mxu0 0.0
    %894 = vmatprep.subr.mxu0 0.0
    %895 = vmatpush1.msra.mxu0 0.0
    %896 = vmatprep.subr.mxu0 0.0
    %897 = vmatpush1.msra.mxu0 0.0
    %898 = vmatprep.subr.mxu0 0.0
    %899 = vmatpush1.msra.mxu0 0.0
    %900 = vmatprep.subr.mxu0 0.0
    %901 = vmatpush1.msra.mxu0 0.0
    %902 = vmatprep.subr.mxu0 0.0
    %903 = vmatpush1.msra.mxu0 0.0
    %904 = vmatprep.subr.mxu0 0.0
    %905 = vmatpush1.msra.mxu0 0.0
    %906 = vmatprep.subr.mxu0 0.0
    %907 = vmatpush1.msra.mxu0 0.0
    %908 = vmatprep.subr.mxu0 0.0
    %909 = vmatpush1.msra.mxu0 0.0
    %910 = vmatprep.subr.mxu0 0.0
    %911 = vmatpush1.msra.mxu0 0.0
    %912 = vmatprep.subr.mxu0 0.0
    %913 = vmatpush1.msra.mxu0 0.0
    %914 = vmatprep.subr.mxu0 0.0
    %915 = vmatpush1.msra.mxu0 0.0
    %916 = vmatprep.subr.mxu0 0.0
    %917 = vmatpush1.msra.mxu0 0.0
    %918 = vmatprep.subr.mxu0 0.0
    %919 = vmatpush1.msra.mxu0 0.0
    %920 = vmatprep.subr.mxu0 0.0
    %921 = vmatpush1.msra.mxu0 0.0
    %922 = vmatprep.subr.mxu0 0.0
    %923 = vmatpush1.msra.mxu0 0.0
    %924 = vmatprep.subr.mxu0 0.0
    %925 = vmatpush1.msra.mxu0 0.0
    %926 = vmatprep.subr.mxu0 0.0
    %927 = vmatpush1.msra.mxu0 0.0
    %928 = vmatprep.subr.mxu0 0.0
    %929 = vmatpush1.msra.mxu0 0.0
    %930 = vmatprep.subr.mxu0 0.0
    %931 = vmatpush1.msra.mxu0 0.0
    %932 = vmatprep.subr.mxu0 0.0
    %933 = vmatpush1.msra.mxu0 0.0
    %934 = vmatprep.subr.mxu0 0.0
    %935 = vmatpush1.msra.mxu0 0.0
    %936 = vmatprep.subr.mxu0 0.0
    %937 = vmatpush1.msra.mxu0 0.0
    %938 = vmatprep.subr.mxu0 0.0
    %939 = vmatpush1.msra.mxu0 0.0
    %940 = vmatprep.subr.mxu0 0.0
    %941 = vmatpush1.msra.mxu0 0.0
    %942 = vmatprep.subr.mxu0 0.0
    %943 = vmatpush1.msra.mxu0 0.0
    %944 = vmatprep.subr.mxu0 0.0
    %945 = vmatpush1.msra.mxu0 0.0
    %946 = vmatprep.subr.mxu0 0.0
    %947 = vmatpush1.msra.mxu0 0.0
    %948 = vmatprep.subr.mxu0 0.0
    %949 = vmatpush1.msra.mxu0 0.0
    %950 = vmatprep.mubr.f32.mxu0 0.0
    %951 = vmatmul.mubr.f32.gmra.mrb[0].mxu0 %v881
    %v952 = vpop.f32.mrb[0].mxu0
    %v953 = vadd.f32 %v48, %v952
    %v954 = vpop.f32.mrb[0].mxu0
    %955 = vmatprep.mubr.f32.mxu0 0.0
    %956 = vmatmul.mubr.f32.gmra.mrb[0].mxu0 %v884
    %v957 = vpop.f32.mrb[0].mxu0
    %v958 = vadd.f32 %v49, %v957
    %v959 = vpop.f32.mrb[0].mxu0
    %960 = vdwg.mxu0
    %961 = vst [vmem:[%s6] sm:$0xff] %v953
    %962 = vst [vmem:[%s6 + $0x8] sm:$0xff] %v958
    // Predicated region
    $region30: #{depthconv1d.1} parent=1 // pred_check
      _
    $region31: #{depthconv1d.1} parent=1 // pred_check_branch
      %964 = sbr.rel (0) target = $region33
    $region32: #{depthconv1d.1} parent=1 // pred_region
      _
    $region33: #{depthconv1d.1} parent=1 // pred_fallthru
      _
    // Predicated region
    $region34: #{depthconv1d.1} parent=1 // pred_check
      _
    $region35: #{depthconv1d.1} parent=1 // pred_check_branch
      %966 = sbr.rel (0) target = $region37
    $region36: #{depthconv1d.1} parent=1 // pred_region
      _
    $region37: #{depthconv1d.1} parent=1 // pred_fallthru
      _
    %967 = vsyncpa [#allocation3], 1

</llo_original>
